<compile_context>
chip_gen: v7x
topology: tpu7x:2x2x1
jax: 0.10.0
libtpu: 0.0.40
codegen_flags: <defaults>
</compile_context>

<pallas_src>
import functools

import jax
import jax.numpy as jnp
from jax import lax
from jax.experimental import pallas as pl
from jax.experimental.pallas import tpu as pltpu


def _laplacian_kernel(xc_ref, xu_ref, xd_ref, o_ref, *, bt, R, W):
    j = pl.program_id(1)
    has_up = j > 0                        # a row tile above exists (else zero pad)
    has_dn = j < pl.num_programs(1) - 1   # a row tile below exists (else zero pad)

    # Small 1-D masks: built once per grid step, broadcast against (R, W).
    col = lax.broadcasted_iota(jnp.int32, (1, W), 1)
    col_first = col == 0
    col_last = col == W - 1
    col_odd = (col % 2) == 1
    col_hi4 = (col % 4) >= 2
    row = lax.broadcasted_iota(jnp.int32, (R, 1), 0)
    row_first = row == 0
    row_last = row == R - 1
    row_odd = (row % 2) == 1
    row_hi4 = (row % 4) >= 2

    def row3_of(v):
        # Horizontal 3-tap with zero padding at the image's left/right edge.
        vl = jnp.where(col_first, 0.0, pltpu.roll(v, 1, axis=1))       # v[:, w-1]
        vr = jnp.where(col_last, 0.0, pltpu.roll(v, W - 1, axis=1))    # v[:, w+1]
        return vl + v + vr

    def body(b, carry):
        x = xc_ref[b, 0, :, :].astype(jnp.float32)
        # One-row halos: last row of the tile above / first row of the tile
        # below.  Contents are ignored (masked to the zero pad) at image edges.
        x_up = xu_ref[b, 0, pl.ds(7, 1), :].astype(jnp.float32)    # row j*R - 1
        x_dn = xd_ref[b, 0, pl.ds(0, 1), :].astype(jnp.float32)    # row (j+1)*R

        # --- stride-1 Laplacian: 9*center - separable 3x3 box ----------------
        row3 = row3_of(x)
        top = jnp.where(has_up, row3_of(x_up), 0.0)    # (1, W)
        bot = jnp.where(has_dn, row3_of(x_dn), 0.0)    # (1, W)
        # TODO(synk): on v7x, replace these axis-0 rolls with sublane-shifted
        # loads from a row-padded VMEM scratch to move work from the 2 XLUs
        # onto the underused vld slots (neutral on v5e/v6e, which are HBM-bound).
        yu = jnp.where(row_first, top, pltpu.roll(row3, 1, axis=0))      # row3[h-1]
        yd = jnp.where(row_last, bot, pltpu.roll(row3, R - 1, axis=0))   # row3[h+1]
        ch0 = 9.0 * x - (yu + row3 + yd)

        # --- stride-2 conv + nearest upsample == ch0[2*(h//2), 2*(w//2)] ------
        # Row-tile origin is a multiple of 8, so local parity == global parity
        # and every replication source stays inside the tile (wrap-around from
        # roll only lands on unselected mask positions).
        t = jnp.where(col_odd, pltpu.roll(ch0, 1, axis=1), ch0)
        ch1 = jnp.where(row_odd, pltpu.roll(t, 1, axis=0), t)

        # --- stride-4 channel derived from the stride-2 one -------------------
        u = jnp.where(col_hi4, pltpu.roll(ch1, 2, axis=1), ch1)
        ch2 = jnp.where(row_hi4, pltpu.roll(u, 2, axis=0), u)

        o_ref[b, 0, :, :] = ch0.astype(o_ref.dtype)
        o_ref[b, 1, :, :] = ch1.astype(o_ref.dtype)
        o_ref[b, 2, :, :] = ch2.astype(o_ref.dtype)
        return carry

    lax.fori_loop(0, bt, body, 0)


def _vmem_capacity_bytes():
    """Per-core VMEM capacity; conservative fallback if the query fails."""
    try:
        info = pltpu.get_tpu_info()
        for name in ("vmem_capacity_bytes", "vmem_bytes", "vmem_size_bytes"):
            v = getattr(info, name, None)
            if v:
                return int(v)
    except Exception:
        pass
    return 64 * 1024 * 1024   # v7x per-TensorCore figure (worst case)


def laplacian_conv(lbl, *, out_dtype=None, row_tile=None):
    """lbl: (N, 1, H, W), any real dtype -> (N, 3, H, W).

    Output dtype defaults to lbl.dtype for floating inputs (matches the torch
    module) and float32 otherwise; pass out_dtype=jnp.bfloat16 to halve output
    write bandwidth if the consumer tolerates it.
    """
    N, C, H, W = lbl.shape
    assert C == 1, "LaplacianConv expects a single input channel"
    assert H % 8 == 0 and W % 4 == 0, "kernel assumes H % 8 == 0 and W % 4 == 0"
    # NOTE: the output last dim maps to lanes; W % 128 == 0 keeps stores
    # unmasked / lane-dense (the unit test's W=16 still works, just wastes
    # store lanes).  TODO(synk): fold multiple rows into lanes when W < 128.

    if out_dtype is None:
        out_dtype = lbl.dtype if jnp.issubdtype(lbl.dtype, jnp.floating) else jnp.float32
    out_dtype = jnp.dtype(out_dtype)
    in_b = jnp.dtype(lbl.dtype).itemsize
    out_b = out_dtype.itemsize

    # ---- per-generation VMEM budget ----------------------------------------
    vmem_cap = _vmem_capacity_bytes()
    vmem_limit = int(min((vmem_cap * 3) // 4, 64 * 1024 * 1024))  # 48 MiB v7x, 64 MiB v5e/v6e
    block_budget = vmem_limit // 2   # double-buffered DMA blocks + live temporaries

    def block_bytes(bt_, r_):
        dma = 2 * bt_ * ((in_b + 3 * out_b) * r_ * W + 2 * 8 * W * in_b)  # double-buffered
        temps = 8 * r_ * W * 4                                            # live f32 temporaries
        return dma + temps

    # ---- row tile: multiple of 8 that divides H and fits the budget --------
    if row_tile is not None:
        assert row_tile % 8 == 0 and H % row_tile == 0, "row_tile must be a mult-of-8 divisor of H"
        R = int(row_tile)
    else:
        R = 8
        for d in range(H, 7, -8):
            if H % d == 0 and block_bytes(1, d) <= block_budget:
                R = d
                break

    # ---- batch tile: fuse small images per grid step (amortize ~0.35us/step)
    bt = 1
    if row_tile is None and R == H:
        for cand in range(min(N, 64), 0, -1):
            if N % cand == 0 and block_bytes(cand, R) <= block_budget:
                bt = cand
                break

    rpb = R // 8                 # 8-row blocks per row tile (for the halo specs)
    n_row_blocks = H // 8
    grid = (N // bt, H // R)

    kernel = functools.partial(_laplacian_kernel, bt=bt, R=R, W=W)
    cost = pl.CostEstimate(flops=14 * N * H * W, transcendentals=0,
                           bytes_accessed=N * H * W * (in_b + 3 * out_b))

    return pl.pallas_call(
        kernel,
        out_shape=jax.ShapeDtypeStruct((N, 3, H, W), out_dtype),
        grid=grid,
        in_specs=[
            # current row tile
            pl.BlockSpec((bt, 1, R, W), lambda i, j: (i, 0, j, 0)),
            # 8-row chunk just above the tile (clamped at the top image edge)
            pl.BlockSpec((bt, 1, 8, W),
                         lambda i, j: (i, 0, jnp.maximum(j * rpb - 1, 0), 0)),
            # 8-row chunk just below the tile (clamped at the bottom image edge)
            pl.BlockSpec((bt, 1, 8, W),
                         lambda i, j: (i, 0, jnp.minimum((j + 1) * rpb, n_row_blocks - 1), 0)),
        ],
        out_specs=pl.BlockSpec((bt, 3, R, W), lambda i, j: (i, 0, j, 0)),
        compiler_params=pltpu.CompilerParams(
            dimension_semantics=("parallel", "parallel"),
            vmem_limit_bytes=vmem_limit),
        cost_estimate=cost,
    )(lbl, lbl, lbl)


def _reference(lbl):
    """Pure-JAX reference matching the PyTorch forward exactly."""
    k = jnp.array([[[[-1.0, -1.0, -1.0],
                     [-1.0,  8.0, -1.0],
                     [-1.0, -1.0, -1.0]]]], dtype=jnp.float32)  # (1,1,3,3) OIHW
    H, W = lbl.shape[2:]

    def conv(x, s):
        return lax.conv_general_dilated(
            x, k, window_strides=(s, s), padding=((1, 1), (1, 1)),
            dimension_numbers=("NCHW", "OIHW", "NCHW"))

    def up_nearest(x):
        h_in, w_in = x.shape[2:]
        hi = jnp.arange(H) * h_in // H
        wi = jnp.arange(W) * w_in // W
        return x[:, :, hi][:, :, :, wi]

    c1 = conv(lbl, 1)
    c2 = up_nearest(conv(lbl, 2))
    c4 = up_nearest(conv(lbl, 4))
    return jnp.concatenate([c1, c2, c4], axis=1)


if __name__ == "__main__":
    key = jax.random.PRNGKey(0)
    N, C, H, W = 2, 1, 16, 16
    lbl = jax.random.normal(key, (N, C, H, W), dtype=jnp.float32)

    ref = jax.block_until_ready(_reference(lbl))

    # Default path (whole-image row tile, fused batch).
    out = jax.block_until_ready(laplacian_conv(lbl))
    assert out.shape == (N, 3, H, W), out.shape
    assert jnp.allclose(out, ref, atol=1e-4, rtol=1e-4), float(
        jnp.max(jnp.abs(out - ref)))

    # Row-tiled path (exercises the 1-row halo / cross-tile logic).
    out_tiled = jax.block_until_ready(laplacian_conv(lbl, row_tile=8))
    assert jnp.allclose(out_tiled, ref, atol=1e-4, rtol=1e-4), float(
        jnp.max(jnp.abs(out_tiled - ref)))

    print("KERNEL_OK")
</pallas_src>

<mosaic_0001>
module attributes {stable_mosaic.version = 11 : i64} {
  func.func @_laplacian_kernel(%arg0: i32, %arg1: i32, %arg2: memref<2x1x16x16xf32, #tpu.memory_space<vmem>>, %arg3: memref<2x1x8x16xf32, #tpu.memory_space<vmem>>, %arg4: memref<2x1x8x16xf32, #tpu.memory_space<vmem>>, %arg5: memref<2x3x16x16xf32, #tpu.memory_space<vmem>>) attributes {dimension_semantics = [#tpu.dimension_semantics<parallel>, #tpu.dimension_semantics<parallel>], iteration_bounds = array<i64: 1, 1>, scalar_prefetch = 0 : i64, scratch_operands = 0 : i64, tpu.core_type = #tpu.core_type<tc>, window_params = [{transform_indices = @transform_0, window_bounds = array<i64: 2, 1, 16, 16>}, {transform_indices = @transform_1, window_bounds = array<i64: 2, 1, 8, 16>}, {transform_indices = @transform_2, window_bounds = array<i64: 2, 1, 8, 16>}, {transform_indices = @transform_3, window_bounds = array<i64: 2, 3, 16, 16>}]} {
    %c0_i32 = arith.constant 0 : i32
    %0 = arith.cmpi sgt, %arg1, %c0_i32 : i32
    %c0_i32_0 = arith.constant 0 : i32
    %1 = arith.cmpi slt, %arg1, %c0_i32_0 : i32
    %2 = tpu.iota {dimensions = array<i32: 1>} : vector<1x16xi32>
    %c0_i32_1 = arith.constant 0 : i32
    %3 = vector.broadcast %c0_i32_1 : i32 to vector<1x16xi32>
    %4 = arith.cmpi eq, %2, %3 : vector<1x16xi32>
    %c15_i32 = arith.constant 15 : i32
    %5 = vector.broadcast %c15_i32 : i32 to vector<1x16xi32>
    %6 = arith.cmpi eq, %2, %5 : vector<1x16xi32>
    %c2_i32 = arith.constant 2 : i32
    %c0_i32_2 = arith.constant 0 : i32
    %7 = arith.cmpi eq, %c2_i32, %c0_i32_2 : i32
    %c1_i32 = arith.constant 1 : i32
    %8 = arith.select %7, %c1_i32, %c2_i32 : i32
    %9 = vector.broadcast %8 : i32 to vector<1x16xi32>
    %10 = arith.remsi %2, %9 : vector<1x16xi32>
    %c0_i32_3 = arith.constant 0 : i32
    %11 = vector.broadcast %c0_i32_3 : i32 to vector<1x16xi32>
    %12 = arith.cmpi ne, %10, %11 : vector<1x16xi32>
    %c0_i32_4 = arith.constant 0 : i32
    %13 = vector.broadcast %c0_i32_4 : i32 to vector<1x16xi32>
    %14 = arith.cmpi slt, %10, %13 : vector<1x16xi32>
    %c0_i32_5 = arith.constant 0 : i32
    %15 = arith.cmpi slt, %8, %c0_i32_5 : i32
    %16 = vector.broadcast %15 : i1 to vector<1x16xi1>
    %17 = vector.broadcast %16 : vector<1x16xi1> to vector<1x16xi1>
    %18 = arith.xori %14, %17 : vector<1x16xi1>
    %19 = arith.andi %18, %12 : vector<1x16xi1>
    %20 = vector.broadcast %8 : i32 to vector<1x16xi32>
    %21 = arith.addi %10, %20 : vector<1x16xi32>
    %22 = arith.select %19, %21, %10 : vector<1x16xi1>, vector<1x16xi32>
    %c1_i32_6 = arith.constant 1 : i32
    %23 = vector.broadcast %c1_i32_6 : i32 to vector<1x16xi32>
    %24 = arith.cmpi eq, %22, %23 : vector<1x16xi32>
    %c4_i32 = arith.constant 4 : i32
    %c0_i32_7 = arith.constant 0 : i32
    %25 = arith.cmpi eq, %c4_i32, %c0_i32_7 : i32
    %c1_i32_8 = arith.constant 1 : i32
    %26 = arith.select %25, %c1_i32_8, %c4_i32 : i32
    %27 = vector.broadcast %26 : i32 to vector<1x16xi32>
    %28 = arith.remsi %2, %27 : vector<1x16xi32>
    %c0_i32_9 = arith.constant 0 : i32
    %29 = vector.broadcast %c0_i32_9 : i32 to vector<1x16xi32>
    %30 = arith.cmpi ne, %28, %29 : vector<1x16xi32>
    %c0_i32_10 = arith.constant 0 : i32
    %31 = vector.broadcast %c0_i32_10 : i32 to vector<1x16xi32>
    %32 = arith.cmpi slt, %28, %31 : vector<1x16xi32>
    %c0_i32_11 = arith.constant 0 : i32
    %33 = arith.cmpi slt, %26, %c0_i32_11 : i32
    %34 = vector.broadcast %33 : i1 to vector<1x16xi1>
    %35 = vector.broadcast %34 : vector<1x16xi1> to vector<1x16xi1>
    %36 = arith.xori %32, %35 : vector<1x16xi1>
    %37 = arith.andi %36, %30 : vector<1x16xi1>
    %38 = vector.broadcast %26 : i32 to vector<1x16xi32>
    %39 = arith.addi %28, %38 : vector<1x16xi32>
    %40 = arith.select %37, %39, %28 : vector<1x16xi1>, vector<1x16xi32>
    %c2_i32_12 = arith.constant 2 : i32
    %41 = vector.broadcast %c2_i32_12 : i32 to vector<1x16xi32>
    %42 = arith.cmpi sge, %40, %41 : vector<1x16xi32>
    %43 = tpu.iota {dimensions = array<i32: 0>} : vector<16x1xi32>
    %c0_i32_13 = arith.constant 0 : i32
    %44 = vector.broadcast %c0_i32_13 : i32 to vector<16x1xi32>
    %45 = arith.cmpi eq, %43, %44 : vector<16x1xi32>
    %c15_i32_14 = arith.constant 15 : i32
    %46 = vector.broadcast %c15_i32_14 : i32 to vector<16x1xi32>
    %47 = arith.cmpi eq, %43, %46 : vector<16x1xi32>
    %c2_i32_15 = arith.constant 2 : i32
    %c0_i32_16 = arith.constant 0 : i32
    %48 = arith.cmpi eq, %c2_i32_15, %c0_i32_16 : i32
    %c1_i32_17 = arith.constant 1 : i32
    %49 = arith.select %48, %c1_i32_17, %c2_i32_15 : i32
    %50 = vector.broadcast %49 : i32 to vector<16x1xi32>
    %51 = arith.remsi %43, %50 : vector<16x1xi32>
    %c0_i32_18 = arith.constant 0 : i32
    %52 = vector.broadcast %c0_i32_18 : i32 to vector<16x1xi32>
    %53 = arith.cmpi ne, %51, %52 : vector<16x1xi32>
    %c0_i32_19 = arith.constant 0 : i32
    %54 = vector.broadcast %c0_i32_19 : i32 to vector<16x1xi32>
    %55 = arith.cmpi slt, %51, %54 : vector<16x1xi32>
    %c0_i32_20 = arith.constant 0 : i32
    %56 = arith.cmpi slt, %49, %c0_i32_20 : i32
    %57 = vector.broadcast %56 : i1 to vector<16x1xi1>
    %58 = vector.broadcast %57 : vector<16x1xi1> to vector<16x1xi1>
    %59 = arith.xori %55, %58 : vector<16x1xi1>
    %60 = arith.andi %59, %53 : vector<16x1xi1>
    %61 = vector.broadcast %49 : i32 to vector<16x1xi32>
    %62 = arith.addi %51, %61 : vector<16x1xi32>
    %63 = arith.select %60, %62, %51 : vector<16x1xi1>, vector<16x1xi32>
    %c1_i32_21 = arith.constant 1 : i32
    %64 = vector.broadcast %c1_i32_21 : i32 to vector<16x1xi32>
    %65 = arith.cmpi eq, %63, %64 : vector<16x1xi32>
    %c4_i32_22 = arith.constant 4 : i32
    %c0_i32_23 = arith.constant 0 : i32
    %66 = arith.cmpi eq, %c4_i32_22, %c0_i32_23 : i32
    %c1_i32_24 = arith.constant 1 : i32
    %67 = arith.select %66, %c1_i32_24, %c4_i32_22 : i32
    %68 = vector.broadcast %67 : i32 to vector<16x1xi32>
    %69 = arith.remsi %43, %68 : vector<16x1xi32>
    %c0_i32_25 = arith.constant 0 : i32
    %70 = vector.broadcast %c0_i32_25 : i32 to vector<16x1xi32>
    %71 = arith.cmpi ne, %69, %70 : vector<16x1xi32>
    %c0_i32_26 = arith.constant 0 : i32
    %72 = vector.broadcast %c0_i32_26 : i32 to vector<16x1xi32>
    %73 = arith.cmpi slt, %69, %72 : vector<16x1xi32>
    %c0_i32_27 = arith.constant 0 : i32
    %74 = arith.cmpi slt, %67, %c0_i32_27 : i32
    %75 = vector.broadcast %74 : i1 to vector<16x1xi1>
    %76 = vector.broadcast %75 : vector<16x1xi1> to vector<16x1xi1>
    %77 = arith.xori %73, %76 : vector<16x1xi1>
    %78 = arith.andi %77, %71 : vector<16x1xi1>
    %79 = vector.broadcast %67 : i32 to vector<16x1xi32>
    %80 = arith.addi %69, %79 : vector<16x1xi32>
    %81 = arith.select %78, %80, %69 : vector<16x1xi1>, vector<16x1xi32>
    %c2_i32_28 = arith.constant 2 : i32
    %82 = vector.broadcast %c2_i32_28 : i32 to vector<16x1xi32>
    %83 = arith.cmpi sge, %81, %82 : vector<16x1xi32>
    %c0_i32_29 = arith.constant 0 : i32
    %c2_i32_30 = arith.constant 2 : i32
    %84 = arith.addi %c0_i32_29, %c2_i32_30 : i32
    %c1_i32_31 = arith.constant 1 : i32
    scf.for %arg6 = %c0_i32_29 to %84 step %c1_i32_31  : i32 {
      %85 = arith.index_cast %arg6 : i32 to index
      %c0 = arith.constant 0 : index
      %c0_33 = arith.constant 0 : index
      %c0_34 = arith.constant 0 : index
      %86 = vector.load %arg2[%85, %c0, %c0_33, %c0_34] : memref<2x1x16x16xf32, #tpu.memory_space<vmem>>, vector<1x1x16x16xf32>
      %87 = vector.shape_cast %86 : vector<1x1x16x16xf32> to vector<16x16xf32>
      %88 = arith.index_cast %arg6 : i32 to index
      %c0_35 = arith.constant 0 : index
      %c7 = arith.constant 7 : index
      %c0_36 = arith.constant 0 : index
      %89 = vector.load %arg3[%88, %c0_35, %c7, %c0_36] : memref<2x1x8x16xf32, #tpu.memory_space<vmem>>, vector<1x1x1x16xf32>
      %90 = vector.shape_cast %89 : vector<1x1x1x16xf32> to vector<1x16xf32>
      %91 = arith.index_cast %arg6 : i32 to index
      %c0_37 = arith.constant 0 : index
      %c0_38 = arith.constant 0 : index
      %c0_39 = arith.constant 0 : index
      %92 = vector.load %arg4[%91, %c0_37, %c0_38, %c0_39] : memref<2x1x8x16xf32, #tpu.memory_space<vmem>>, vector<1x1x1x16xf32>
      %93 = vector.shape_cast %92 : vector<1x1x1x16xf32> to vector<1x16xf32>
      %c1_i32_40 = arith.constant 1 : i32
      %94 = tpu.dynamic_rotate %87 by %c1_i32_40 dim 1 : vector<16x16xf32>, i32 -> vector<16x16xf32>
      %cst = arith.constant 0.000000e+00 : f32
      %95 = vector.shape_cast %4 : vector<1x16xi1> to vector<1x16xi1>
      %96 = vector.broadcast %95 : vector<1x16xi1> to vector<16x16xi1>
      %97 = vector.broadcast %cst : f32 to vector<16x16xf32>
      %98 = arith.select %96, %97, %94 : vector<16x16xi1>, vector<16x16xf32>
      %c15_i32_41 = arith.constant 15 : i32
      %99 = tpu.dynamic_rotate %87 by %c15_i32_41 dim 1 : vector<16x16xf32>, i32 -> vector<16x16xf32>
      %cst_42 = arith.constant 0.000000e+00 : f32
      %100 = vector.shape_cast %6 : vector<1x16xi1> to vector<1x16xi1>
      %101 = vector.broadcast %100 : vector<1x16xi1> to vector<16x16xi1>
      %102 = vector.broadcast %cst_42 : f32 to vector<16x16xf32>
      %103 = arith.select %101, %102, %99 : vector<16x16xi1>, vector<16x16xf32>
      %104 = arith.addf %98, %87 : vector<16x16xf32>
      %105 = arith.addf %104, %103 : vector<16x16xf32>
      %c1_i32_43 = arith.constant 1 : i32
      %106 = tpu.dynamic_rotate %90 by %c1_i32_43 dim 1 : vector<1x16xf32>, i32 -> vector<1x16xf32>
      %cst_44 = arith.constant 0.000000e+00 : f32
      %107 = vector.broadcast %cst_44 : f32 to vector<1x16xf32>
      %108 = arith.select %4, %107, %106 : vector<1x16xi1>, vector<1x16xf32>
      %c15_i32_45 = arith.constant 15 : i32
      %109 = tpu.dynamic_rotate %90 by %c15_i32_45 dim 1 : vector<1x16xf32>, i32 -> vector<1x16xf32>
      %cst_46 = arith.constant 0.000000e+00 : f32
      %110 = vector.broadcast %cst_46 : f32 to vector<1x16xf32>
      %111 = arith.select %6, %110, %109 : vector<1x16xi1>, vector<1x16xf32>
      %112 = arith.addf %108, %90 : vector<1x16xf32>
      %113 = arith.addf %112, %111 : vector<1x16xf32>
      %cst_47 = arith.constant 0.000000e+00 : f32
      %114 = vector.broadcast %cst_47 : f32 to vector<1x16xf32>
      %115 = arith.select %0, %113, %114 : vector<1x16xf32>
      %c1_i32_48 = arith.constant 1 : i32
      %116 = tpu.dynamic_rotate %93 by %c1_i32_48 dim 1 : vector<1x16xf32>, i32 -> vector<1x16xf32>
      %cst_49 = arith.constant 0.000000e+00 : f32
      %117 = vector.broadcast %cst_49 : f32 to vector<1x16xf32>
      %118 = arith.select %4, %117, %116 : vector<1x16xi1>, vector<1x16xf32>
      %c15_i32_50 = arith.constant 15 : i32
      %119 = tpu.dynamic_rotate %93 by %c15_i32_50 dim 1 : vector<1x16xf32>, i32 -> vector<1x16xf32>
      %cst_51 = arith.constant 0.000000e+00 : f32
      %120 = vector.broadcast %cst_51 : f32 to vector<1x16xf32>
      %121 = arith.select %6, %120, %119 : vector<1x16xi1>, vector<1x16xf32>
      %122 = arith.addf %118, %93 : vector<1x16xf32>
      %123 = arith.addf %122, %121 : vector<1x16xf32>
      %cst_52 = arith.constant 0.000000e+00 : f32
      %124 = vector.broadcast %cst_52 : f32 to vector<1x16xf32>
      %125 = arith.select %1, %123, %124 : vector<1x16xf32>
      %c1_i32_53 = arith.constant 1 : i32
      %126 = tpu.dynamic_rotate %105 by %c1_i32_53 dim 0 : vector<16x16xf32>, i32 -> vector<16x16xf32>
      %127 = vector.shape_cast %45 : vector<16x1xi1> to vector<16x1xi1>
      %128 = vector.broadcast %127 : vector<16x1xi1> to vector<16x16xi1>
      %129 = vector.shape_cast %115 : vector<1x16xf32> to vector<1x16xf32>
      %130 = vector.broadcast %129 : vector<1x16xf32> to vector<16x16xf32>
      %131 = arith.select %128, %130, %126 : vector<16x16xi1>, vector<16x16xf32>
      %c15_i32_54 = arith.constant 15 : i32
      %132 = tpu.dynamic_rotate %105 by %c15_i32_54 dim 0 : vector<16x16xf32>, i32 -> vector<16x16xf32>
      %133 = vector.shape_cast %47 : vector<16x1xi1> to vector<16x1xi1>
      %134 = vector.broadcast %133 : vector<16x1xi1> to vector<16x16xi1>
      %135 = vector.shape_cast %125 : vector<1x16xf32> to vector<1x16xf32>
      %136 = vector.broadcast %135 : vector<1x16xf32> to vector<16x16xf32>
      %137 = arith.select %134, %136, %132 : vector<16x16xi1>, vector<16x16xf32>
      %cst_55 = arith.constant 9.000000e+00 : f32
      %138 = vector.broadcast %cst_55 : f32 to vector<16x16xf32>
      %139 = arith.mulf %138, %87 : vector<16x16xf32>
      %140 = arith.addf %131, %105 : vector<16x16xf32>
      %141 = arith.addf %140, %137 : vector<16x16xf32>
      %142 = arith.subf %139, %141 : vector<16x16xf32>
      %c1_i32_56 = arith.constant 1 : i32
      %143 = tpu.dynamic_rotate %142 by %c1_i32_56 dim 1 : vector<16x16xf32>, i32 -> vector<16x16xf32>
      %144 = vector.shape_cast %24 : vector<1x16xi1> to vector<1x16xi1>
      %145 = vector.broadcast %144 : vector<1x16xi1> to vector<16x16xi1>
      %146 = arith.select %145, %143, %142 : vector<16x16xi1>, vector<16x16xf32>
      %c1_i32_57 = arith.constant 1 : i32
      %147 = tpu.dynamic_rotate %146 by %c1_i32_57 dim 0 : vector<16x16xf32>, i32 -> vector<16x16xf32>
      %148 = vector.shape_cast %65 : vector<16x1xi1> to vector<16x1xi1>
      %149 = vector.broadcast %148 : vector<16x1xi1> to vector<16x16xi1>
      %150 = arith.select %149, %147, %146 : vector<16x16xi1>, vector<16x16xf32>
      %c2_i32_58 = arith.constant 2 : i32
      %151 = tpu.dynamic_rotate %150 by %c2_i32_58 dim 1 : vector<16x16xf32>, i32 -> vector<16x16xf32>
      %152 = vector.shape_cast %42 : vector<1x16xi1> to vector<1x16xi1>
      %153 = vector.broadcast %152 : vector<1x16xi1> to vector<16x16xi1>
      %154 = arith.select %153, %151, %150 : vector<16x16xi1>, vector<16x16xf32>
      %c2_i32_59 = arith.constant 2 : i32
      %155 = tpu.dynamic_rotate %154 by %c2_i32_59 dim 0 : vector<16x16xf32>, i32 -> vector<16x16xf32>
      %156 = vector.shape_cast %83 : vector<16x1xi1> to vector<16x1xi1>
      %157 = vector.broadcast %156 : vector<16x1xi1> to vector<16x16xi1>
      %158 = arith.select %157, %155, %154 : vector<16x16xi1>, vector<16x16xf32>
      %159 = arith.index_cast %arg6 : i32 to index
      %c0_60 = arith.constant 0 : index
      %c0_61 = arith.constant 0 : index
      %c0_62 = arith.constant 0 : index
      %160 = vector.load %arg5[%159, %c0_60, %c0_61, %c0_62] : memref<2x3x16x16xf32, #tpu.memory_space<vmem>>, vector<1x1x16x16xf32>
      %161 = vector.shape_cast %160 : vector<1x1x16x16xf32> to vector<16x16xf32>
      %162 = vector.shape_cast %142 : vector<16x16xf32> to vector<1x1x16x16xf32>
      tpu.vector_store %arg5[%159, %c0_60, %c0_61, %c0_62], %162 {strides = array<i32>} : memref<2x3x16x16xf32, #tpu.memory_space<vmem>>, vector<1x1x16x16xf32>,
      %163 = arith.index_cast %arg6 : i32 to index
      %c1 = arith.constant 1 : index
      %c0_63 = arith.constant 0 : index
      %c0_64 = arith.constant 0 : index
      %164 = vector.load %arg5[%163, %c1, %c0_63, %c0_64] : memref<2x3x16x16xf32, #tpu.memory_space<vmem>>, vector<1x1x16x16xf32>
      %165 = vector.shape_cast %164 : vector<1x1x16x16xf32> to vector<16x16xf32>
      %166 = vector.shape_cast %150 : vector<16x16xf32> to vector<1x1x16x16xf32>
      tpu.vector_store %arg5[%163, %c1, %c0_63, %c0_64], %166 {strides = array<i32>} : memref<2x3x16x16xf32, #tpu.memory_space<vmem>>, vector<1x1x16x16xf32>,
      %167 = arith.index_cast %arg6 : i32 to index
      %c2 = arith.constant 2 : index
      %c0_65 = arith.constant 0 : index
      %c0_66 = arith.constant 0 : index
      %168 = vector.load %arg5[%167, %c2, %c0_65, %c0_66] : memref<2x3x16x16xf32, #tpu.memory_space<vmem>>, vector<1x1x16x16xf32>
      %169 = vector.shape_cast %168 : vector<1x1x16x16xf32> to vector<16x16xf32>
      %170 = vector.shape_cast %158 : vector<16x16xf32> to vector<1x1x16x16xf32>
      tpu.vector_store %arg5[%167, %c2, %c0_65, %c0_66], %170 {strides = array<i32>} : memref<2x3x16x16xf32, #tpu.memory_space<vmem>>, vector<1x1x16x16xf32>,
    }
    %c2_i32_32 = arith.constant 2 : i32
    return
  }
  func.func @transform_0(%arg0: i32, %arg1: i32) -> (i32, i32, i32, i32) {
    %c0_i32 = arith.constant 0 : i32
    %c0_i32_0 = arith.constant 0 : i32
    %c0_i32_1 = arith.constant 0 : i32
    return %arg0, %c0_i32, %arg1, %c0_i32_0 : i32, i32, i32, i32
  }
  func.func @transform_1(%arg0: i32, %arg1: i32) -> (i32, i32, i32, i32) {
    %c2_i32 = arith.constant 2 : i32
    %0 = arith.muli %arg1, %c2_i32 : i32
    %c1_i32 = arith.constant 1 : i32
    %1 = arith.subi %0, %c1_i32 : i32
    %c0_i32 = arith.constant 0 : i32
    %2 = arith.maxsi %1, %c0_i32 : i32
    %c0_i32_0 = arith.constant 0 : i32
    %c0_i32_1 = arith.constant 0 : i32
    %c0_i32_2 = arith.constant 0 : i32
    return %arg0, %c0_i32_0, %2, %c0_i32_1 : i32, i32, i32, i32
  }
  func.func @transform_2(%arg0: i32, %arg1: i32) -> (i32, i32, i32, i32) {
    %c1_i32 = arith.constant 1 : i32
    %0 = arith.addi %arg1, %c1_i32 : i32
    %c2_i32 = arith.constant 2 : i32
    %1 = arith.muli %0, %c2_i32 : i32
    %c1_i32_0 = arith.constant 1 : i32
    %2 = arith.minsi %1, %c1_i32_0 : i32
    %c0_i32 = arith.constant 0 : i32
    %c0_i32_1 = arith.constant 0 : i32
    %c0_i32_2 = arith.constant 0 : i32
    return %arg0, %c0_i32, %2, %c0_i32_1 : i32, i32, i32, i32
  }
  func.func @transform_3(%arg0: i32, %arg1: i32) -> (i32, i32, i32, i32) {
    %c0_i32 = arith.constant 0 : i32
    %c0_i32_0 = arith.constant 0 : i32
    %c0_i32_1 = arith.constant 0 : i32
    return %arg0, %c0_i32, %arg1, %c0_i32_0 : i32, i32, i32, i32
  }
}

</mosaic_0001>

<llo_original>
// kernel: tpu_custom_call.1
$region0: #{tpu_custom_call.1}
  #allocation0 [shape = 'u32[]', space=smem, size = 0x4, offset = 0x4, fixed_abs, tag = 'smem constant byte address 0x4 - core index']
  #allocation1 [shape = 'u32[144,128]{1,0:T(1,128)}', space=vmem, size = 0x12000, scoped, tag = 'internal scratch']
  %s0 = inlined_call_operand.hbm [shape: f32[2,1,16,16], index: 0, kind: input, shape index: {}]
  %s1 = inlined_call_operand.hbm [shape: f32[2,1,16,16], index: 1, kind: input, shape index: {}]
  %s2 = inlined_call_operand.hbm [shape: f32[2,1,16,16], index: 2, kind: input, shape index: {}]
  %s3 = inlined_call_operand.hbm [shape: f32[2,3,16,16], index: 3, kind: output, shape index: {}]
  %s4 = sld [smem:[#allocation0]]
  $region41: #{tpu_custom_call.1} parent=0
    _
  %s6 = ssub.s32 1, %s4
  %s7 = scalar_select 0, %s6, %s4
  $region1: #{tpu_custom_call.1} parent=0
    #allocation2 [shape = 'u8[16384]{0}', space=vmem, size = 0x4000, scoped, tag = 'input window, operand 0, single buffered']
    #allocation3 [shape = 's32[1]{0}', space=sflag, size = 0x4, scoped, tag = 'scoped memory for tpu_custom_call.1']
    #allocation4 [shape = 's32[1]{0}', space=sflag, size = 0x4, scoped, tag = 'scoped memory for tpu_custom_call.1']
    #allocation5 [shape = 'u8[8192]{0}', space=vmem, size = 0x2000, scoped, tag = 'input window, operand 1, single buffered']
    #allocation6 [shape = 's32[1]{0}', space=sflag, size = 0x4, scoped, tag = 'scoped memory for tpu_custom_call.1']
    #allocation7 [shape = 'u8[8192]{0}', space=vmem, size = 0x2000, scoped, tag = 'input window, operand 2, single buffered']
    #allocation8 [shape = 'u8[49152]{0}', space=vmem, size = 0xc000, scoped, tag = 'output window, operand 0, single buffered']
    %8 = vsyncpa [#allocation3], 0
    %9 = vsyncpa [#allocation6], 0
    %10 = vsyncpa [#allocation4], 0
    // Predicated region
    $region2: #{tpu_custom_call.1} parent=1 // pred_check
      _
    $region3: #{tpu_custom_call.1} parent=1 // pred_check_branch
      %12 = sbr.rel (0) target = $region5
    $region4: #{tpu_custom_call.1} parent=1 // pred_region
      %s14 = ssub.s32 512, 512
      %15 = vsyncadd [#allocation3], %s14
      %s16 = sshll.u32 [#allocation2], 4
      %s17 = int_to_ptr.vmem [resolvable:$true] %s16
      %22 = dma.hbm_to_vmem [thread:$0]  %s0, 512, %s17, [#allocation3], 128, 128, 8
    $region5: #{tpu_custom_call.1} parent=1 // pred_fallthru
      _
    // Predicated region
    $region6: #{tpu_custom_call.1} parent=1 // pred_check
      _
    $region7: #{tpu_custom_call.1} parent=1 // pred_check_branch
      %24 = sbr.rel (0) target = $region9
    $region8: #{tpu_custom_call.1} parent=1 // pred_region
      %s25 = smul.u32 0, 2
      %s26 = ssub.s32 %s25, 1
      %p27 = scmp.gt.s32.totalorder %s26, 0
      %s28 = scalar_select %p27, %s26, 0
      %s30 = ssub.s32 256, 256
      %31 = vsyncadd [#allocation6], %s30
      %s32 = smul.addr %s28, 128
      %s33 = scalar_lea.hbm %s1, %s32
      %s34 = sshll.u32 [#allocation5], 4
      %s35 = int_to_ptr.vmem [resolvable:$true] %s34
      %40 = dma.hbm_to_vmem [thread:$0]  %s33, 256, %s35, [#allocation6], 256, 128, 8
    $region9: #{tpu_custom_call.1} parent=1 // pred_fallthru
      _
    // Predicated region
    $region10: #{tpu_custom_call.1} parent=1 // pred_check
      _
    $region11: #{tpu_custom_call.1} parent=1 // pred_check_branch
      %42 = sbr.rel (0) target = $region13
    $region12: #{tpu_custom_call.1} parent=1 // pred_region
      %s43 = sadd.s32 0, 1
      %s44 = smul.u32 %s43, 2
      %p45 = scmp.lt.s32.totalorder %s44, 1
      %s46 = scalar_select %p45, %s44, 1
      %s48 = ssub.s32 256, 256
      %49 = vsyncadd [#allocation6], %s48
      %s50 = smul.addr %s46, 128
      %s51 = scalar_lea.hbm %s2, %s50
      %s52 = sshll.u32 [#allocation7], 4
      %s53 = int_to_ptr.vmem [resolvable:$true] %s52
      %58 = dma.hbm_to_vmem [thread:$0]  %s51, 256, %s53, [#allocation6], 256, 128, 8
    $region13: #{tpu_custom_call.1} parent=1 // pred_fallthru
      _
    // Predicated region
    $region14: #{tpu_custom_call.1} parent=1 // pred_check
      _
    $region15: #{tpu_custom_call.1} parent=1 // pred_check_branch
      %60 = sbr.rel (0) target = $region17
    $region16: #{tpu_custom_call.1} parent=1 // pred_region
      %61 = dma.done [#allocation3], 512
    $region17: #{tpu_custom_call.1} parent=1 // pred_fallthru
      _
    // Predicated region
    $region18: #{tpu_custom_call.1} parent=1 // pred_check
      _
    $region19: #{tpu_custom_call.1} parent=1 // pred_check_branch
      %63 = sbr.rel (0) target = $region21
    $region20: #{tpu_custom_call.1} parent=1 // pred_region
      %64 = dma.done [#allocation6], 256
    $region21: #{tpu_custom_call.1} parent=1 // pred_fallthru
      _
    // Predicated region
    $region22: #{tpu_custom_call.1} parent=1 // pred_check
      _
    $region23: #{tpu_custom_call.1} parent=1 // pred_check_branch
      %66 = sbr.rel (0) target = $region25
    $region24: #{tpu_custom_call.1} parent=1 // pred_region
      %67 = dma.done [#allocation6], 256
    $region25: #{tpu_custom_call.1} parent=1 // pred_fallthru
      _
    %s68 = smul.u32 0, 2
    %s69 = ssub.s32 %s68, 1
    %p70 = scmp.gt.s32.totalorder %s69, 0
    %s71 = scalar_select %p70, %s69, 0
    %s72 = sadd.s32 0, 1
    %s73 = smul.u32 %s72, 2
    %p74 = scmp.lt.s32.totalorder %s73, 1
    %s75 = scalar_select %p74, %s73, 1
    %p76 = scmp.gt.s32.totalorder 0, 0
    %p77 = scmp.lt.s32.totalorder 0, 0
    %v78 = vlaneseq
    %v79 = vand.u32 %v78, 127
    %vm80 = vcmp.eq.s32.totalorder %v79, 0
    %vm81 = vcmp.eq.s32.totalorder %v79, 15
    %vm82 = vcmp.lt.s32.totalorder %v79, 0
    %v83 = vsub.s32 0, %v79
    %v84 = vsel %vm82, %v83, %v79
    %v85 = vshrl.u32 %v84, 1
    %v86 = vand.u32 %v84, 1
    %v87 = vsub.s32 0, %v86
    %v88 = vsel %vm82, %v87, %v86
    %vm89 = vcmp.ne.s32.totalorder %v88, 0
    %vm90 = vcmp.lt.s32.totalorder %v88, 0
    %vm91 = vmand %vm90, %vm89
    %v92 = vadd.s32 %v88, 2
    %v93 = vsel %vm91, %v92, %v88
    %vm94 = vcmp.eq.s32.totalorder %v93, 1
    %vm95 = vcmp.lt.s32.totalorder %v79, 0
    %v96 = vsub.s32 0, %v79
    %v97 = vsel %vm95, %v96, %v79
    %v98 = vshrl.u32 %v97, 2
    %v99 = vand.u32 %v97, 3
    %v100 = vsub.s32 0, %v99
    %v101 = vsel %vm95, %v100, %v99
    %vm102 = vcmp.ne.s32.totalorder %v101, 0
    %vm103 = vcmp.lt.s32.totalorder %v101, 0
    %vm104 = vmand %vm103, %vm102
    %v105 = vadd.s32 %v101, 4
    %v106 = vsel %vm104, %v105, %v101
    %vm107 = vcmp.ge.s32.totalorder %v106, 2
    %v108 = vlaneseq
    %v109 = vshrl.u32 %v108, 7
    %v110 = vadd.s32 %v109, 8
    %vm111 = vcmp.eq.s32.totalorder %v109, 0
    %vm112 = vcmp.eq.s32.totalorder %v110, 0
    %vm113 = vcmp.eq.s32.totalorder %v109, 15
    %vm114 = vcmp.eq.s32.totalorder %v110, 15
    %vm115 = vcmp.lt.s32.totalorder %v109, 0
    %v116 = vsub.s32 0, %v109
    %v117 = vsel %vm115, %v116, %v109
    %v118 = vshrl.u32 %v117, 1
    %v119 = vand.u32 %v117, 1
    %v120 = vsub.s32 0, %v119
    %v121 = vsel %vm115, %v120, %v119
    %vm122 = vcmp.lt.s32.totalorder %v110, 0
    %v123 = vsub.s32 0, %v110
    %v124 = vsel %vm122, %v123, %v110
    %v125 = vshrl.u32 %v124, 1
    %v126 = vand.u32 %v124, 1
    %v127 = vsub.s32 0, %v126
    %v128 = vsel %vm122, %v127, %v126
    %vm129 = vcmp.ne.s32.totalorder %v121, 0
    %vm130 = vcmp.ne.s32.totalorder %v128, 0
    %vm131 = vcmp.lt.s32.totalorder %v121, 0
    %vm132 = vcmp.lt.s32.totalorder %v128, 0
    %vm133 = vmand %vm131, %vm129
    %vm134 = vmand %vm132, %vm130
    %v135 = vadd.s32 %v121, 2
    %v136 = vadd.s32 %v128, 2
    %v137 = vsel %vm133, %v135, %v121
    %v138 = vsel %vm134, %v136, %v128
    %vm139 = vcmp.eq.s32.totalorder %v137, 1
    %vm140 = vcmp.eq.s32.totalorder %v138, 1
    %vm141 = vcmp.lt.s32.totalorder %v109, 0
    %v142 = vsub.s32 0, %v109
    %v143 = vsel %vm141, %v142, %v109
    %v144 = vshrl.u32 %v143, 2
    %v145 = vand.u32 %v143, 3
    %v146 = vsub.s32 0, %v145
    %v147 = vsel %vm141, %v146, %v145
    %vm148 = vcmp.lt.s32.totalorder %v110, 0
    %v149 = vsub.s32 0, %v110
    %v150 = vsel %vm148, %v149, %v110
    %v151 = vshrl.u32 %v150, 2
    %v152 = vand.u32 %v150, 3
    %v153 = vsub.s32 0, %v152
    %v154 = vsel %vm148, %v153, %v152
    %vm155 = vcmp.ne.s32.totalorder %v147, 0
    %vm156 = vcmp.ne.s32.totalorder %v154, 0
    %vm157 = vcmp.lt.s32.totalorder %v147, 0
    %vm158 = vcmp.lt.s32.totalorder %v154, 0
    %vm159 = vmand %vm157, %vm155
    %vm160 = vmand %vm158, %vm156
    %v161 = vadd.s32 %v147, 4
    %v162 = vadd.s32 %v154, 4
    %v163 = vsel %vm159, %v161, %v147
    %v164 = vsel %vm160, %v162, %v154
    %vm165 = vcmp.ge.s32.totalorder %v163, 2
    %vm166 = vcmp.ge.s32.totalorder %v164, 2
    loop: start=0, step=1, limit=2
    $region26: #{tpu_custom_call.1} parent=1 // loop_pre_header
      _
    $region27: #{tpu_custom_call.1} parent=1 // loop_header
      %s168 = sphi 0, %s172
      %p169 = scmp.ge.s32.totalorder %s168, 2
    $region28: #{tpu_custom_call.1} parent=1 // loop_header_branch
      %171 = sbr.rel (%p169) target = $region32
    $region29: #{tpu_custom_call.1} parent=1 // loop_body
      %s173 = smul.u32 %s168, 16
      %s174 = scalar_lea.vmem [#allocation2], %s173
      %v175 = vld [vmem:[%s174] sm:$0xff]
      %v176 = vld [vmem:[%s174 + $0x8] sm:$0xff]
      %s177 = smul.u32 %s168, 8
      %s178 = scalar_lea.vmem [#allocation5], %s177
      %v179 = vld [vmem:[%s178 + $0x7] sm:$0x1]
      %s180 = scalar_lea.vmem [#allocation7], %s177
      %v181 = vld [vmem:[%s180] sm:$0x1]
      %vm182 = vcmask 1047680
      %183 = vrot.lane.b32.xlu0 %v175, 16
      %v184 = vpop.permute.xlu0 %183
      %v185 = vsel %vm182, %v184, %v175
      %186 = vrot.lane.b32.xlu0 %v176, 16
      %v187 = vpop.permute.xlu0 %186
      %v188 = vsel %vm182, %v187, %v176
      %189 = vrot.lane.b32.xlu0 %v185, 16
      %v190 = vpop.permute.xlu0 %189
      %191 = vrot.lane.b32.xlu0 %v188, 16
      %v192 = vpop.permute.xlu0 %191
      %v193 = vsel %vm182, %v190, %v175
      %v194 = vsel %vm182, %v192, %v176
      %v195 = vsel %vm80, 1, 0
      %vm196 = vcmp.eq.s32.totalorder %v195, 1
      %199 = vrot.lane.b32.xlu0 %v193, 113
      %v200 = vpop.permute.xlu0 %199
      %201 = vrot.lane.b32.xlu0 %v194, 113
      %v202 = vpop.permute.xlu0 %201
      %v205 = vsel %vm196, 0.0, %v200
      %v206 = vsel %vm196, 0.0, %v202
      %v207 = vsel %vm81, 1, 0
      %vm208 = vcmp.eq.s32.totalorder %v207, 1
      %209 = vrot.lane.b32.xlu0 %v193, 127
      %v210 = vpop.permute.xlu0 %209
      %211 = vrot.lane.b32.xlu0 %v194, 127
      %v212 = vpop.permute.xlu0 %211
      %v215 = vsel %vm208, 0.0, %v210
      %v216 = vsel %vm208, 0.0, %v212
      %v217 = vadd.f32 %v205, %v175
      %v218 = vadd.f32 %v206, %v176
      %v219 = vadd.f32 %v217, %v215
      %v220 = vadd.f32 %v218, %v216
      %221 = vrot.lane.b32.xlu0 %v179, 16
      %v222 = vpop.permute.xlu0 %221
      %v223 = vsel %vm182, %v222, %v179
      %224 = vrot.lane.b32.xlu0 %v223, 16
      %v225 = vpop.permute.xlu0 %224
      %v226 = vsel %vm182, %v225, %v179
      %228 = vrot.lane.b32.xlu0 %v226, 113
      %v229 = vpop.permute.xlu0 %228
      %v231 = vsel %vm80, 0.0, %v229
      %232 = vrot.lane.b32.xlu0 %v226, 127
      %v233 = vpop.permute.xlu0 %232
      %v235 = vsel %vm81, 0.0, %v233
      %v236 = vadd.f32 %v231, %v179
      %v237 = vadd.f32 %v236, %v235
      %s238 = scalar_select %p76, 1, 0
      %v239 = vstv %s238
      %vm240 = vcmp.eq.s32.totalorder %v239, 1
      %v241 = vsel %vm240, %v237, 0.0
      %242 = vrot.lane.b32.xlu0 %v181, 16
      %v243 = vpop.permute.xlu0 %242
      %v244 = vsel %vm182, %v243, %v181
      %245 = vrot.lane.b32.xlu0 %v244, 16
      %v246 = vpop.permute.xlu0 %245
      %v247 = vsel %vm182, %v246, %v181
      %249 = vrot.lane.b32.xlu0 %v247, 113
      %v250 = vpop.permute.xlu0 %249
      %v252 = vsel %vm80, 0.0, %v250
      %253 = vrot.lane.b32.xlu0 %v247, 127
      %v254 = vpop.permute.xlu0 %253
      %v256 = vsel %vm81, 0.0, %v254
      %v257 = vadd.f32 %v252, %v181
      %v258 = vadd.f32 %v257, %v256
      %s259 = scalar_select %p77, 1, 0
      %v260 = vstv %s259
      %vm261 = vcmp.eq.s32.totalorder %v260, 1
      %v262 = vsel %vm261, %v258, 0.0
      %v263 = vrot.slane %v219, 7
      %v264 = vrot.slane %v220, 7
      %vm265 = vcmp.lt.s32.totalorder %v109, 1
      %v266 = vsel %vm265, %v263, %v264
      %v267 = vsel %vm265, %v264, %v263
      %v268 = vsel %vm111, 1, 0
      %v269 = vsel %vm112, 1, 0
      %vm270 = vcmp.eq.s32.totalorder %v268, 1
      %vm271 = vcmp.eq.s32.totalorder %v269, 1
      %v272 = vlaneseq
      %v273 = vshrl.u32 %v272, 7
      %v274 = vsub.s32 0, %v273
      %v275 = vrot.slane %v241, %v274
      %v276 = vsel %vm270, %v275, %v267
      %v277 = vsel %vm271, %v275, %v266
      %v278 = vrot.slane %v219, 1
      %v279 = vrot.slane %v220, 1
      %vm280 = vcmp.lt.s32.totalorder %v109, 7
      %v281 = vsel %vm280, %v278, %v279
      %v282 = vsel %vm280, %v279, %v278
      %v283 = vsel %vm113, 1, 0
      %v284 = vsel %vm114, 1, 0
      %vm285 = vcmp.eq.s32.totalorder %v283, 1
      %vm286 = vcmp.eq.s32.totalorder %v284, 1
      %v287 = vlaneseq
      %v288 = vshrl.u32 %v287, 7
      %v289 = vsub.s32 0, %v288
      %v290 = vrot.slane %v262, %v289
      %v291 = vsel %vm285, %v290, %v281
      %v292 = vsel %vm286, %v290, %v282
      %v293 = vmul.f32 %v175, 9.0
      %v294 = vmul.f32 %v176, 9.0
      %v295 = vadd.f32 %v276, %v219
      %v296 = vadd.f32 %v277, %v220
      %v297 = vadd.f32 %v295, %v291
      %v298 = vadd.f32 %v296, %v292
      %v299 = vsub.f32 %v293, %v297
      %v300 = vsub.f32 %v294, %v298
      %301 = vrot.lane.b32.xlu0 %v299, 16
      %v302 = vpop.permute.xlu0 %301
      %v303 = vsel %vm182, %v302, %v299
      %304 = vrot.lane.b32.xlu0 %v300, 16
      %v305 = vpop.permute.xlu0 %304
      %v306 = vsel %vm182, %v305, %v300
      %307 = vrot.lane.b32.xlu0 %v303, 16
      %v308 = vpop.permute.xlu0 %307
      %309 = vrot.lane.b32.xlu0 %v306, 16
      %v310 = vpop.permute.xlu0 %309
      %v311 = vsel %vm182, %v308, %v299
      %v312 = vsel %vm182, %v310, %v300
      %v313 = vsel %vm94, 1, 0
      %vm314 = vcmp.eq.s32.totalorder %v313, 1
      %317 = vrot.lane.b32.xlu0 %v311, 113
      %v318 = vpop.permute.xlu0 %317
      %319 = vrot.lane.b32.xlu0 %v312, 113
      %v320 = vpop.permute.xlu0 %319
      %v323 = vsel %vm314, %v318, %v299
      %v324 = vsel %vm314, %v320, %v300
      %v325 = vrot.slane %v323, 7
      %v326 = vrot.slane %v324, 7
      %v327 = vsel %vm265, %v325, %v326
      %v328 = vsel %vm265, %v326, %v325
      %v329 = vsel %vm139, 1, 0
      %v330 = vsel %vm140, 1, 0
      %vm331 = vcmp.eq.s32.totalorder %v329, 1
      %vm332 = vcmp.eq.s32.totalorder %v330, 1
      %v333 = vsel %vm331, %v328, %v323
      %v334 = vsel %vm332, %v327, %v324
      %335 = vrot.lane.b32.xlu0 %v333, 16
      %v336 = vpop.permute.xlu0 %335
      %v337 = vsel %vm182, %v336, %v333
      %338 = vrot.lane.b32.xlu0 %v334, 16
      %v339 = vpop.permute.xlu0 %338
      %v340 = vsel %vm182, %v339, %v334
      %341 = vrot.lane.b32.xlu0 %v337, 16
      %v342 = vpop.permute.xlu0 %341
      %343 = vrot.lane.b32.xlu0 %v340, 16
      %v344 = vpop.permute.xlu0 %343
      %v345 = vsel %vm182, %v342, %v333
      %v346 = vsel %vm182, %v344, %v334
      %v347 = vsel %vm107, 1, 0
      %vm348 = vcmp.eq.s32.totalorder %v347, 1
      %351 = vrot.lane.b32.xlu0 %v345, 114
      %v352 = vpop.permute.xlu0 %351
      %353 = vrot.lane.b32.xlu0 %v346, 114
      %v354 = vpop.permute.xlu0 %353
      %v357 = vsel %vm348, %v352, %v333
      %v358 = vsel %vm348, %v354, %v334
      %v359 = vrot.slane %v357, 6
      %v360 = vrot.slane %v358, 6
      %vm361 = vcmp.lt.s32.totalorder %v109, 2
      %v362 = vsel %vm361, %v359, %v360
      %v363 = vsel %vm361, %v360, %v359
      %v364 = vsel %vm165, 1, 0
      %v365 = vsel %vm166, 1, 0
      %vm366 = vcmp.eq.s32.totalorder %v364, 1
      %vm367 = vcmp.eq.s32.totalorder %v365, 1
      %v368 = vsel %vm366, %v363, %v357
      %v369 = vsel %vm367, %v362, %v358
      %s370 = smul.u32 %s168, 48
      %s371 = scalar_lea.vmem [#allocation8], %s370
      %vm372 = vcmask 130048
      %373 = vst.msk [vmem:[%s371] sm:$0xff] %vm372, %v299
      %374 = vst.msk [vmem:[%s371 + $0x8] sm:$0xff] %vm372, %v300
      %s375 = sadd.s32 16, %s370
      %s376 = scalar_lea.vmem [#allocation8], %s375
      %377 = vst.msk [vmem:[%s376] sm:$0xff] %vm372, %v333
      %378 = vst.msk [vmem:[%s376 + $0x8] sm:$0xff] %vm372, %v334
      %s379 = sadd.s32 32, %s370
      %s380 = scalar_lea.vmem [#allocation8], %s379
      %381 = vst.msk [vmem:[%s380] sm:$0xff] %vm372, %v368
      %382 = vst.msk [vmem:[%s380 + $0x8] sm:$0xff] %vm372, %v369
    $region30: #{tpu_custom_call.1} parent=1 // loop_footer
      %s172 = sadd.s32 1, %s168
    $region31: #{tpu_custom_call.1} parent=1 // loop_footer_branch
      %167 = sbr.rel target = $region27
    $region32: #{tpu_custom_call.1} parent=1 // loop_exit
      _
    // Predicated region
    $region33: #{tpu_custom_call.1} parent=1 // pred_check
      _
    $region34: #{tpu_custom_call.1} parent=1 // pred_check_branch
      %384 = sbr.rel (0) target = $region36
    $region35: #{tpu_custom_call.1} parent=1 // pred_region
      %s386 = ssub.s32 1536, 1536
      %387 = vsyncadd [#allocation4], %s386
      %s388 = sshll.u32 [#allocation8], 4
      %s389 = int_to_ptr.vmem [resolvable:$true] %s388
      %394 = dma.vmem_to_hbm [thread:$0]  %s389, 1536, %s3, [#allocation4], 128, 128, 8
    $region36: #{tpu_custom_call.1} parent=1 // pred_fallthru
      _
    // Predicated region
    $region37: #{tpu_custom_call.1} parent=1 // pred_check
      _
    $region38: #{tpu_custom_call.1} parent=1 // pred_check_branch
      %396 = sbr.rel (0) target = $region40
    $region39: #{tpu_custom_call.1} parent=1 // pred_region
      %397 = dma.done [#allocation4], 1536
    $region40: #{tpu_custom_call.1} parent=1 // pred_fallthru
      _
    %398 = vsyncpa [#allocation3], 1
    %399 = vsyncpa [#allocation6], 1
    %400 = vsyncpa [#allocation4], 1

</llo_original>
